<compile_context>
chip_gen: v5e
topology: v5e:2x2
jax: 0.10.0
libtpu: 0.0.40
codegen_flags: <defaults>
</compile_context>

<pallas_src>
import jax
import jax.numpy as jnp
from jax.experimental import pallas as pl
from jax.experimental.pallas import tpu as pltpu


def _round_up(n: int, m: int) -> int:
    return ((n + m - 1) // m) * m


# ----------------------------------------------------------------------------
# Kernel body: two MXU dots (f32 accumulation), f32 bias adds + ReLU.
# Memory/overhead-bound at these shapes -> keep the body minimal.
# ----------------------------------------------------------------------------
def _adaptive_node_kernel(x_ref, w1_ref, b1_ref, w23_ref, b23_ref, o_ref):
    x = x_ref[...].astype(w1_ref.dtype)
    h = jnp.dot(x, w1_ref[...], preferred_element_type=jnp.float32) + b1_ref[...]
    h = jnp.maximum(h, 0.0)
    out = jnp.dot(h.astype(w23_ref.dtype), w23_ref[...],
                  preferred_element_type=jnp.float32) + b23_ref[...]
    o_ref[...] = out.astype(o_ref.dtype)


# ----------------------------------------------------------------------------
# One-time parameter preparation (hoisted out of the per-call path).
# ----------------------------------------------------------------------------
def prepare_fused_params(params, *, compute_dtype=None):
    """Fuse Linear(hidden->in) @ Linear(in->out) and pad the hidden dim once.

    compute_dtype: dtype of the matmul operands (e.g. jnp.bfloat16 on
    v6e/v7x). Accumulation / bias / ReLU stay f32. Default: f32 (exact).
    """
    op_dtype = jnp.float32 if compute_dtype is None else jnp.dtype(compute_dtype)

    w1 = params["w1"].astype(jnp.float32)
    b1 = params["b1"].astype(jnp.float32).reshape(1, -1)
    w2 = params["w2"].astype(jnp.float32)
    b2 = params["b2"].astype(jnp.float32).reshape(1, -1)
    w3 = params["w3"].astype(jnp.float32)
    b3 = params["b3"].astype(jnp.float32).reshape(1, -1)

    in_size, hidden = w1.shape
    out_size = w3.shape[1]

    # Algebraic fusion: no nonlinearity between the 2nd and 3rd Linear.
    w23 = w2 @ w3                      # [hidden, out_size]  (f32)
    b23 = b2 @ w3 + b3                 # [1, out_size]       (f32)

    # Lane-pad only the internal hidden dim (done once, offline). Padded
    # hidden columns see b1=0 -> ReLU(0)=0 and zero w23 rows => bit-exact.
    # Input/output dims stay un-padded: full-last-dim blocks are legal and
    # keep per-call HBM traffic at its true size.
    hp = _round_up(hidden, 128)
    w1p = jnp.pad(w1, ((0, 0), (0, hp - hidden))).astype(op_dtype)
    b1p = jnp.pad(b1, ((0, 0), (0, hp - hidden)))              # stays f32
    w23p = jnp.pad(w23, ((0, hp - hidden), (0, 0))).astype(op_dtype)

    return {
        "w1": w1p, "b1": b1p, "w23": w23p, "b23": b23,
        "in_size": in_size, "hidden": hidden, "out_size": out_size,
        "compute_dtype": op_dtype,
    }


def _choose_tb(batch: int, block_b: int, sublane: int) -> int:
    """Pick the batch tile: sublane-aligned, big, MXU-friendly, megacore-aware."""
    b_aligned = _round_up(batch, sublane)
    tb = min(_round_up(max(block_b, sublane), sublane), b_aligned)
    # Prefer a 256-row tile (fills the 256-wide MXU on v6e/v7x) when it does
    # not increase the padded batch.
    if tb >= 256:
        tb256 = (tb // 256) * 256
        if _round_up(b_aligned, tb256) <= _round_up(b_aligned, tb):
            tb = tb256
    # Keep >= 2 grid steps when the batch is large enough so both v7x
    # TensorCores get work on the "parallel" batch axis.
    if tb >= b_aligned >= 512:
        tb = _round_up(pl.cdiv(b_aligned, 2), 256)
    return tb


# ----------------------------------------------------------------------------
# Forward wrapper.
# ----------------------------------------------------------------------------
def adaptive_node_forward(x, fused_params, *, block_b=1024):
    """AdaptiveNode forward.  x: [B, input_size] (1-D / >2-D normalized here).

    fused_params: output of prepare_fused_params() (computed once per param
    set, NOT per forward call).
    """
    w1, b1 = fused_params["w1"], fused_params["b1"]
    w23, b23 = fused_params["w23"], fused_params["b23"]
    in_size = fused_params["in_size"]
    out_size = fused_params["out_size"]
    op_dtype = fused_params["compute_dtype"]
    hp = w1.shape[1]

    # Mirror the PyTorch dim handling (glue, stays in plain JAX).
    if x.ndim == 1:
        x = x.reshape(1, -1)
    elif x.ndim > 2:
        x = x.reshape(x.shape[0], -1)
    if x.shape[-1] != in_size:
        raise ValueError(f"Expected input size {in_size}, got {x.shape[-1]}")

    out_dtype = x.dtype
    if x.dtype != op_dtype:
        # One cast pass; bandwidth-sensitive callers should hand in op_dtype x.
        x = x.astype(op_dtype)

    B = x.shape[0]
    sublane = 16 if jnp.dtype(op_dtype).itemsize == 2 else 8
    TB = _choose_tb(B, block_b, sublane)
    Bp = _round_up(B, TB)
    if Bp != B:
        # Batch-only zero pad (feature dim untouched). Padded rows are
        # discarded below; they never reach the caller.
        x = jnp.pad(x, ((0, Bp - B), (0, 0)))

    grid = (Bp // TB,)

    def _nbytes(a):
        return a.size * a.dtype.itemsize

    cost = pl.CostEstimate(
        flops=2 * Bp * (in_size * hp + hp * out_size),
        transcendentals=0,
        bytes_accessed=(_nbytes(x) + _nbytes(w1) + _nbytes(b1) + _nbytes(w23)
                        + _nbytes(b23)
                        + Bp * out_size * jnp.dtype(out_dtype).itemsize),
    )

    def resident(arr):
        # Constant index_map -> block never changes -> one buffer is enough
        # (saves VMEM headroom, notably on v7x's 64 MiB parts).
        return pl.BlockSpec(arr.shape, lambda i: (0,) * arr.ndim,
                            pipeline_mode=pl.Buffered(1))

    out = pl.pallas_call(
        _adaptive_node_kernel,
        out_shape=jax.ShapeDtypeStruct((Bp, out_size), out_dtype),
        grid=grid,
        in_specs=[
            pl.BlockSpec((TB, in_size), lambda i: (i, 0)),  # x: tiled over batch
            resident(w1), resident(b1),
            resident(w23), resident(b23),
        ],
        out_specs=pl.BlockSpec((TB, out_size), lambda i: (i, 0)),
        compiler_params=pltpu.CompilerParams(
            dimension_semantics=("parallel",),
        ),
        cost_estimate=cost,
    )(x, w1, b1, w23, b23)

    return out if Bp == B else out[:B]


# ----------------------------------------------------------------------------
# Parameter init + pure-JAX reference (for the self-check).
# ----------------------------------------------------------------------------
def init_params(key, input_size, hidden_size, output_size, dtype=jnp.float32):
    """PyTorch-Linear-like uniform init. Weights stored [in, out] so every
    layer is a plain x @ W + b on the MXU."""
    ks = jax.random.split(key, 6)

    def lin(kw, kb, fan_in, fan_out):
        bound = 1.0 / jnp.sqrt(jnp.array(fan_in, dtype))
        w = jax.random.uniform(kw, (fan_in, fan_out), dtype, -bound, bound)
        b = jax.random.uniform(kb, (1, fan_out), dtype, -bound, bound)
        return w, b

    w1, b1 = lin(ks[0], ks[1], input_size, hidden_size)
    w2, b2 = lin(ks[2], ks[3], hidden_size, input_size)
    w3, b3 = lin(ks[4], ks[5], input_size, output_size)
    return {"w1": w1, "b1": b1, "w2": w2, "b2": b2, "w3": w3, "b3": b3}


def _reference_forward(x, p):
    if x.ndim == 1:
        x = x.reshape(1, -1)
    elif x.ndim > 2:
        x = x.reshape(x.shape[0], -1)
    h = jnp.maximum(x @ p["w1"] + p["b1"], 0.0)
    f = h @ p["w2"] + p["b2"]
    return f @ p["w3"] + p["b3"]


if __name__ == "__main__":
    input_size, hidden_size, output_size = 32, 64, 16
    batch = 8

    key = jax.random.PRNGKey(0)
    k_param, k_x = jax.random.split(key)
    params = init_params(k_param, input_size, hidden_size, output_size)

    # Fusion / padding / casts happen ONCE here, not per forward call.
    fused_f32 = prepare_fused_params(params)

    x = jax.random.normal(k_x, (batch, input_size), dtype=jnp.float32)
    out = jax.block_until_ready(adaptive_node_forward(x, fused_f32))
    ref = _reference_forward(x, params)
    assert out.shape == (batch, output_size)
    assert jnp.allclose(out, ref, atol=1e-5, rtol=1e-5)

    # >2-D input is flattened exactly like the PyTorch module (4*8 == 32).
    x3 = jax.random.normal(k_x, (2, 4, 8), dtype=jnp.float32)
    out3 = jax.block_until_ready(adaptive_node_forward(x3, fused_f32))
    assert out3.shape == (2, output_size)
    assert jnp.allclose(out3, _reference_forward(x3, params), atol=1e-5, rtol=1e-5)

    # bf16-operand path (recommended on v6e/v7x): dtype-aware tolerance.
    fused_bf16 = prepare_fused_params(params, compute_dtype=jnp.bfloat16)
    out_bf16 = jax.block_until_ready(adaptive_node_forward(x, fused_bf16))
    assert out_bf16.shape == (batch, output_size)
    assert jnp.allclose(out_bf16, ref, atol=5e-2, rtol=5e-2)

    print("KERNEL_OK")
</pallas_src>

<mosaic_0001>
module attributes {stable_mosaic.version = 11 : i64} {
  func.func @_adaptive_node_kernel(%arg0: i32, %arg1: memref<8x32xf32, #tpu.memory_space<vmem>>, %arg2: memref<32x128xf32, #tpu.memory_space<vmem>>, %arg3: memref<1x128xf32, #tpu.memory_space<vmem>>, %arg4: memref<128x16xf32, #tpu.memory_space<vmem>>, %arg5: memref<1x16xf32, #tpu.memory_space<vmem>>, %arg6: memref<8x16xf32, #tpu.memory_space<vmem>>) attributes {dimension_semantics = [#tpu.dimension_semantics<parallel>], iteration_bounds = array<i64: 1>, scalar_prefetch = 0 : i64, scratch_operands = 0 : i64, tpu.core_type = #tpu.core_type<tc>, window_params = [{transform_indices = @transform_0, window_bounds = array<i64: 8, 32>}, {pipeline_mode = #tpu.pipeline_mode<synchronous>, transform_indices = @transform_1, window_bounds = array<i64: 32, 128>}, {pipeline_mode = #tpu.pipeline_mode<synchronous>, transform_indices = @transform_2, window_bounds = array<i64: 1, 128>}, {pipeline_mode = #tpu.pipeline_mode<synchronous>, transform_indices = @transform_3, window_bounds = array<i64: 128, 16>}, {pipeline_mode = #tpu.pipeline_mode<synchronous>, transform_indices = @transform_4, window_bounds = array<i64: 1, 16>}, {transform_indices = @transform_5, window_bounds = array<i64: 8, 16>}]} {
    %c0 = arith.constant 0 : index
    %c0_0 = arith.constant 0 : index
    %0 = vector.load %arg1[%c0, %c0_0] : memref<8x32xf32, #tpu.memory_space<vmem>>, vector<8x32xf32>
    %c0_1 = arith.constant 0 : index
    %c0_2 = arith.constant 0 : index
    %1 = vector.load %arg2[%c0_1, %c0_2] : memref<32x128xf32, #tpu.memory_space<vmem>>, vector<32x128xf32>
    %cst = arith.constant dense<0.000000e+00> : vector<8x128xf32>
    %2 = tpu.matmul %0, %1, %cst {dimension_numbers = #tpu.dot_dimension_numbers<[1], [0], [0], [1], [0, 0, 1, 1], [], []>} : vector<8x32xf32>, vector<32x128xf32>, vector<8x128xf32> -> vector<8x128xf32>
    %c0_3 = arith.constant 0 : index
    %c0_4 = arith.constant 0 : index
    %3 = vector.load %arg3[%c0_3, %c0_4] : memref<1x128xf32, #tpu.memory_space<vmem>>, vector<1x128xf32>
    %4 = vector.broadcast %3 : vector<1x128xf32> to vector<8x128xf32>
    %5 = arith.addf %2, %4 : vector<8x128xf32>
    %cst_5 = arith.constant 0.000000e+00 : f32
    %6 = vector.broadcast %cst_5 : f32 to vector<8x128xf32>
    %7 = arith.maximumf %5, %6 : vector<8x128xf32>
    %c0_6 = arith.constant 0 : index
    %c0_7 = arith.constant 0 : index
    %8 = vector.load %arg4[%c0_6, %c0_7] : memref<128x16xf32, #tpu.memory_space<vmem>>, vector<128x16xf32>
    %cst_8 = arith.constant dense<0.000000e+00> : vector<8x16xf32>
    %9 = tpu.matmul %7, %8, %cst_8 {dimension_numbers = #tpu.dot_dimension_numbers<[1], [0], [0], [1], [0, 0, 1, 1], [], []>} : vector<8x128xf32>, vector<128x16xf32>, vector<8x16xf32> -> vector<8x16xf32>
    %c0_9 = arith.constant 0 : index
    %c0_10 = arith.constant 0 : index
    %10 = vector.load %arg5[%c0_9, %c0_10] : memref<1x16xf32, #tpu.memory_space<vmem>>, vector<1x16xf32>
    %11 = vector.broadcast %10 : vector<1x16xf32> to vector<8x16xf32>
    %12 = arith.addf %9, %11 : vector<8x16xf32>
    %c0_11 = arith.constant 0 : index
    %c0_12 = arith.constant 0 : index
    %13 = vector.load %arg6[%c0_11, %c0_12] : memref<8x16xf32, #tpu.memory_space<vmem>>, vector<8x16xf32>
    tpu.vector_store %arg6[%c0_11, %c0_12], %12 {strides = array<i32>} : memref<8x16xf32, #tpu.memory_space<vmem>>, vector<8x16xf32>,
    return
  }
  func.func @transform_0(%arg0: i32) -> (i32, i32) {
    %c0_i32 = arith.constant 0 : i32
    %c0_i32_0 = arith.constant 0 : i32
    return %arg0, %c0_i32 : i32, i32
  }
  func.func @transform_1(%arg0: i32) -> (i32, i32) {
    %c0_i32 = arith.constant 0 : i32
    %c0_i32_0 = arith.constant 0 : i32
    %c0_i32_1 = arith.constant 0 : i32
    return %c0_i32, %c0_i32_0 : i32, i32
  }
  func.func @transform_2(%arg0: i32) -> (i32, i32) {
    %c0_i32 = arith.constant 0 : i32
    %c0_i32_0 = arith.constant 0 : i32
    %c0_i32_1 = arith.constant 0 : i32
    return %c0_i32, %c0_i32_0 : i32, i32
  }
  func.func @transform_3(%arg0: i32) -> (i32, i32) {
    %c0_i32 = arith.constant 0 : i32
    %c0_i32_0 = arith.constant 0 : i32
    %c0_i32_1 = arith.constant 0 : i32
    return %c0_i32, %c0_i32_0 : i32, i32
  }
  func.func @transform_4(%arg0: i32) -> (i32, i32) {
    %c0_i32 = arith.constant 0 : i32
    %c0_i32_0 = arith.constant 0 : i32
    %c0_i32_1 = arith.constant 0 : i32
    return %c0_i32, %c0_i32_0 : i32, i32
  }
  func.func @transform_5(%arg0: i32) -> (i32, i32) {
    %c0_i32 = arith.constant 0 : i32
    %c0_i32_0 = arith.constant 0 : i32
    return %arg0, %c0_i32 : i32, i32
  }
}

</mosaic_0001>

<llo_original>
// kernel: tpu_custom_call.1
$region0: #{tpu_custom_call.1}
  #allocation0 [shape = 'u32[]', space=smem, size = 0x4, offset = 0x4, fixed_abs, tag = 'smem constant byte address 0x4 - core index']
  #allocation1 [shape = 'u32[72,128]{1,0:T(1,128)}', space=vmem, size = 0x9000, scoped, tag = 'internal scratch']
  %s0 = inlined_call_operand.vmem [shape: f32[8,32], index: 0, kind: input, shape index: {}]
  %s1 = inlined_call_operand.vmem [shape: f32[32,128], index: 1, kind: input, shape index: {}]
  %s2 = inlined_call_operand.vmem [shape: f32[1,128], index: 2, kind: input, shape index: {}]
  %s3 = inlined_call_operand.vmem [shape: f32[128,16], index: 3, kind: input, shape index: {}]
  %s4 = inlined_call_operand.vmem [shape: f32[1,16], index: 4, kind: input, shape index: {}]
  %s5 = inlined_call_operand.hbm [shape: f32[8,16], index: 5, kind: output, shape index: {}]
  %s6 = sld [smem:[#allocation0]]
  $region30: #{tpu_custom_call.1} parent=0
    _
  %s8 = ssub.s32 1, %s6
  %s9 = scalar_select 0, %s8, %s6
  $region1: #{tpu_custom_call.1} parent=0
    #allocation2 [shape = 'u8[4096]{0}', space=vmem, size = 0x1000, scoped, tag = 'output window, operand 0, single buffered']
    #allocation3 [shape = 's32[1]{0}', space=sflag, size = 0x4, scoped, tag = 'scoped memory for tpu_custom_call.1']
    %10 = vsyncpa [#allocation3], 0
    // Predicated region
    $region2: #{tpu_custom_call.1} parent=1 // pred_check
      _
    $region3: #{tpu_custom_call.1} parent=1 // pred_check_branch
      %12 = sbr.rel (0) target = $region5
    $region4: #{tpu_custom_call.1} parent=1 // pred_region
      _
    $region5: #{tpu_custom_call.1} parent=1 // pred_fallthru
      _
    // Predicated region
    $region6: #{tpu_custom_call.1} parent=1 // pred_check
      _
    $region7: #{tpu_custom_call.1} parent=1 // pred_check_branch
      %14 = sbr.rel (0) target = $region9
    $region8: #{tpu_custom_call.1} parent=1 // pred_region
      _
    $region9: #{tpu_custom_call.1} parent=1 // pred_fallthru
      _
    // Predicated region
    $region10: #{tpu_custom_call.1} parent=1 // pred_check
      _
    $region11: #{tpu_custom_call.1} parent=1 // pred_check_branch
      %16 = sbr.rel (0) target = $region13
    $region12: #{tpu_custom_call.1} parent=1 // pred_region
      _
    $region13: #{tpu_custom_call.1} parent=1 // pred_fallthru
      _
    // Predicated region
    $region14: #{tpu_custom_call.1} parent=1 // pred_check
      _
    $region15: #{tpu_custom_call.1} parent=1 // pred_check_branch
      %18 = sbr.rel (0) target = $region17
    $region16: #{tpu_custom_call.1} parent=1 // pred_region
      _
    $region17: #{tpu_custom_call.1} parent=1 // pred_fallthru
      _
    // Predicated region
    $region18: #{tpu_custom_call.1} parent=1 // pred_check
      _
    $region19: #{tpu_custom_call.1} parent=1 // pred_check_branch
      %20 = sbr.rel (0) target = $region21
    $region20: #{tpu_custom_call.1} parent=1 // pred_region
      _
    $region21: #{tpu_custom_call.1} parent=1 // pred_fallthru
      _
    %v21 = vld [vmem:[%s0] sm:$0xff]
    %v22 = vld [vmem:[%s1] sm:$0xff]
    %v23 = vld [vmem:[%s1 + $0x8] sm:$0xff]
    %v24 = vld [vmem:[%s1 + $0x10] sm:$0xff]
    %v25 = vld [vmem:[%s1 + $0x18] sm:$0xff]
    %v26 = vld [vmem:[%s2] sm:$0x1]
    %v28 = vperm.slane %v26, 0
    %vm30 = vcmask 261120
    %v32 = vsel %vm30, %v21, 0
    %34 = vmatpush.msra.mxu0 0.0
    %35 = vmatpush.msra.mxu0 0.0
    %36 = vmatpush.msra.mxu0 0.0
    %37 = vmatpush.msra.mxu0 0.0
    %38 = vmatpush.msra.mxu0 0.0
    %39 = vmatpush.msra.mxu0 0.0
    %40 = vmatpush.msra.mxu0 0.0
    %41 = vmatpush.msra.mxu0 0.0
    %42 = vmatpush.msra.mxu0 0.0
    %43 = vmatpush.msra.mxu0 0.0
    %44 = vmatpush.msra.mxu0 0.0
    %45 = vmatpush.msra.mxu0 0.0
    %46 = vmatpush.msra.mxu0 %v25
    %47 = vmatpush.msra.mxu0 %v24
    %48 = vmatpush.msra.mxu0 %v23
    %49 = vmatpush.msra.mxu0 %v22
    %50 = vmatmul.f32.gmra.mxu0 %v32
    %v51 = vpop.f32.mrf.mxu0
    %v52 = vadd.f32 %v28, %v51
    %53 = vdwg.mxu0
    %v54 = vmax.f32 %v52, 0.0
    %v55 = vld [vmem:[%s3] sm:$0xff]
    %v56 = vld [vmem:[%s3 + $0x8] sm:$0xff]
    %v57 = vld [vmem:[%s3 + $0x10] sm:$0xff]
    %v58 = vld [vmem:[%s3 + $0x18] sm:$0xff]
    %v59 = vld [vmem:[%s3 + $0x20] sm:$0xff]
    %v60 = vld [vmem:[%s3 + $0x28] sm:$0xff]
    %v61 = vld [vmem:[%s3 + $0x30] sm:$0xff]
    %v62 = vld [vmem:[%s3 + $0x38] sm:$0xff]
    %v63 = vld [vmem:[%s3 + $0x40] sm:$0xff]
    %v64 = vld [vmem:[%s3 + $0x48] sm:$0xff]
    %v65 = vld [vmem:[%s3 + $0x50] sm:$0xff]
    %v66 = vld [vmem:[%s3 + $0x58] sm:$0xff]
    %v67 = vld [vmem:[%s3 + $0x60] sm:$0xff]
    %v68 = vld [vmem:[%s3 + $0x68] sm:$0xff]
    %v69 = vld [vmem:[%s3 + $0x70] sm:$0xff]
    %v70 = vld [vmem:[%s3 + $0x78] sm:$0xff]
    %v71 = vld [vmem:[%s4] sm:$0x1]
    %v73 = vperm.slane %v71, 0
    %75 = vmatpush.msra.mxu0 %v70
    %76 = vmatpush.msra.mxu0 %v69
    %77 = vmatpush.msra.mxu0 %v68
    %78 = vmatpush.msra.mxu0 %v67
    %79 = vmatpush.msra.mxu0 %v66
    %80 = vmatpush.msra.mxu0 %v65
    %81 = vmatpush.msra.mxu0 %v64
    %82 = vmatpush.msra.mxu0 %v63
    %83 = vmatpush.msra.mxu0 %v62
    %84 = vmatpush.msra.mxu0 %v61
    %85 = vmatpush.msra.mxu0 %v60
    %86 = vmatpush.msra.mxu0 %v59
    %87 = vmatpush.msra.mxu0 %v58
    %88 = vmatpush.msra.mxu0 %v57
    %89 = vmatpush.msra.mxu0 %v56
    %90 = vmatpush.msra.mxu0 %v55
    %91 = vmatmul.f32.gmra.mxu0 %v54
    %v92 = vpop.f32.mrf.mxu0
    %v93 = vadd.f32 %v73, %v92
    %94 = vdwg.mxu0
    %vm95 = vcmask 130048
    %96 = vst.msk [vmem:[#allocation2] sm:$0xff] %vm95, %v93
    // Predicated region
    $region22: #{tpu_custom_call.1} parent=1 // pred_check
      _
    $region23: #{tpu_custom_call.1} parent=1 // pred_check_branch
      %98 = sbr.rel (0) target = $region25
    $region24: #{tpu_custom_call.1} parent=1 // pred_region
      %100 = vsyncadd [#allocation3], 0
      %s102 = sshll.u32 [#allocation2], 4
      %s103 = int_to_ptr.vmem [resolvable:$true] %s102
      %s104 = sshll.u32 %s5, 4
      %s105 = int_to_ptr.hbm [resolvable:$true] %s104
      %107 = dma.vmem_to_hbm [thread:$0]  %s103, 128, %s105, [#allocation3]
    $region25: #{tpu_custom_call.1} parent=1 // pred_fallthru
      _
    // Predicated region
    $region26: #{tpu_custom_call.1} parent=1 // pred_check
      _
    $region27: #{tpu_custom_call.1} parent=1 // pred_check_branch
      %109 = sbr.rel (0) target = $region29
    $region28: #{tpu_custom_call.1} parent=1 // pred_region
      %111 = dma.done [#allocation3], 128
    $region29: #{tpu_custom_call.1} parent=1 // pred_fallthru
      _
    %112 = vsyncpa [#allocation3], 1

</llo_original>
